<compile_context>
chip_gen: v7x
topology: tpu7x:2x2x1
jax: 0.10.0
libtpu: 0.0.40
codegen_flags: <defaults>
</compile_context>

<pallas_src>
import jax
import jax.numpy as jnp
from jax.experimental import pallas as pl
from jax.experimental.pallas import tpu as pltpu

# ---- scaled-down demo dims (real: NJ=196, FD=263 -> F=51548, NN=512, LD=256)
NUM_JOINTS = 8
FEAT_DIM = 32
N_FEATURES = NUM_JOINTS * FEAT_DIM     # 256
NUM_NEURONS = 128
LATENT_D = 64
BATCH = 8                              # sublane-aligned batch

LEAKY_SLOPE = 0.01                     # nn.LeakyReLU default
BN_EPS = 1e-5                          # nn.BatchNorm1d default
LANE = 128


def _round_up(x, m):
    return (x + m - 1) // m * m


def _select_vmem_limit():
    # v7x: 64 MiB VMEM per TC -> 48 MiB scoped cap; v5e/v6e: 128 MiB -> 96 MiB.
    try:
        vmem = pltpu.get_tpu_info().vmem_capacity_bytes
    except Exception:
        vmem = None
    if vmem is not None and vmem <= 96 * 1024 * 1024:
        return 48 * 1024 * 1024
    return 96 * 1024 * 1024


VMEM_LIMIT = _select_vmem_limit()

# Weight-streaming tile sizes.  At real size these are ~2-4 MiB bf16 weight
# tiles per buffer (double-buffered by BlockSpec), ~13 grid steps per kernel,
# ~3% zero padding of F.  At demo size they clamp to the lane-padded F.
ENC_TK = min(4096, _round_up(N_FEATURES, LANE))   # rows of w1 per step
DEC_TF = min(4096, _round_up(N_FEATURES, LANE))   # cols of wd3 per step
F_PAD_ENC = _round_up(N_FEATURES, ENC_TK)
F_PAD_DEC = _round_up(N_FEATURES, DEC_TF)
# NN-column split of kernel A1 (leading "parallel" axis; 2 blocks at real
# NN=512 so both v7x TensorCores stream half of w1).
ENC_TN = min(256, NUM_NEURONS)


def _leaky_relu(x):
    return jnp.where(x > 0, x, LEAKY_SLOPE * x)


# ----------------------- kernel A1: streamed Linear(F, NN) ------------------
def enc_stream_kernel(x_ref, w1_ref, b1_ref, h_ref, acc_ref):
    # grid = (n over NN columns [parallel], k over F rows [arbitrary])
    k = pl.program_id(1)

    @pl.when(k == 0)
    def _():
        acc_ref[...] = jnp.zeros_like(acc_ref)

    # bf16 x bf16 -> f32 MXU accumulation; no in-kernel weight upcast.
    acc_ref[...] += jnp.dot(x_ref[...], w1_ref[...],
                            preferred_element_type=jnp.float32)

    @pl.when(k == pl.num_programs(1) - 1)
    def _():
        # BN1 folded into w1/b1 in the wrapper; LeakyReLU epilogue.
        h_ref[...] = _leaky_relu(acc_ref[...] + b1_ref[...]).astype(h_ref.dtype)


# ----------------- kernel A2: latent head + decoder trunk (tiny) ------------
def latent_trunk_kernel(h_ref, eps_ref,
                        w2_ref, b2_ref,      # BN2-folded Linear(NN, NN), bf16
                        w3_ref, b3_ref,      # Linear(NN, NN), bf16
                        wml_ref, bml_ref,    # fused [mu | logvar]: (NN, 2*LD)
                        wd1_ref, bd1_ref,    # decoder Linear(LD, NN), bf16
                        wd2_ref, bd2_ref,    # decoder Linear(NN, NN), bf16
                        z_ref, mu_ref, scale_ref, d_ref):
    h = h_ref[...]                                               # bf16 (B, NN)
    # BN2 folded into w2/b2; Dropout(0.1) is identity in eval.
    h2 = jnp.dot(h, w2_ref[...], preferred_element_type=jnp.float32) + b2_ref[...]
    h3 = (jnp.dot(h2.astype(jnp.bfloat16), w3_ref[...],
                  preferred_element_type=jnp.float32) + b3_ref[...])
    ml = (jnp.dot(h3.astype(jnp.bfloat16), wml_ref[...],
                  preferred_element_type=jnp.float32) + bml_ref[...])
    mu = ml[:, :LATENT_D]
    logvar = ml[:, LATENT_D:]
    scale = jnp.logaddexp(logvar, 0.0)            # F.softplus
    z = mu + scale * eps_ref[...]                 # Normal(mu, scale).rsample()
    z_ref[...] = z
    mu_ref[...] = mu
    scale_ref[...] = scale
    # decoder trunk: Linear(LD,NN)+LReLU -> Dropout(id) -> Linear(NN,NN)+LReLU
    d = _leaky_relu(jnp.dot(z.astype(jnp.bfloat16), wd1_ref[...],
                            preferred_element_type=jnp.float32) + bd1_ref[...])
    d = _leaky_relu(jnp.dot(d.astype(jnp.bfloat16), wd2_ref[...],
                            preferred_element_type=jnp.float32) + bd2_ref[...])
    d_ref[...] = d.astype(d_ref.dtype)            # emit bf16 for kernel B


# ----------------------- kernel B: streamed Linear(NN, F) -------------------
def decoder_out_kernel(d_ref, wd3_ref, bd3_ref, rec_ref):
    # one lane-dense output-F tile; bf16 x bf16 -> f32, no weight upcast.
    rec_ref[...] = (jnp.dot(d_ref[...], wd3_ref[...],
                            preferred_element_type=jnp.float32) + bd3_ref[...])


# ------------------------------ wrapper --------------------------------------
def vposer_forward(features, eps, kparams):
    """features: (B, NJ, FD); eps: (B, LD).
    Returns (feats_rst, (q_z_sample, (mu, scale)))."""
    (w1, b1, w2, b2, w3, b3, wml, bml,
     wd1, bd1, wd2, bd2, wd3, bd3) = kparams
    B = features.shape[0]

    x = features.reshape(B, -1)                               # BatchFlatten
    x = jnp.pad(x, ((0, 0), (0, F_PAD_ENC - N_FEATURES)))     # tile-align F
    x = x.astype(jnp.bfloat16)          # bf16 LHS -> native bf16 MXU path

    # --- kernel A1: streamed encoder Linear(F, NN)
    num_n = NUM_NEURONS // ENC_TN
    num_k = F_PAD_ENC // ENC_TK
    flops_a = 2 * B * F_PAD_ENC * NUM_NEURONS
    bytes_a = (num_n * B * F_PAD_ENC * 2 + F_PAD_ENC * NUM_NEURONS * 2
               + NUM_NEURONS * 4 + B * NUM_NEURONS * 2)
    h = pl.pallas_call(
        enc_stream_kernel,
        out_shape=jax.ShapeDtypeStruct((B, NUM_NEURONS), jnp.bfloat16),
        grid_spec=pltpu.PrefetchScalarGridSpec(
            num_scalar_prefetch=0,
            grid=(num_n, num_k),
            in_specs=[
                pl.BlockSpec((B, ENC_TK), lambda n, k: (0, k)),        # x bf16
                pl.BlockSpec((ENC_TK, ENC_TN), lambda n, k: (k, n)),   # w1 bf16
                pl.BlockSpec((1, ENC_TN), lambda n, k: (0, n)),        # b1 f32
            ],
            out_specs=pl.BlockSpec((B, ENC_TN), lambda n, k: (0, n)),
            scratch_shapes=[pltpu.VMEM((B, ENC_TN), jnp.float32)],
        ),
        compiler_params=pltpu.CompilerParams(
            dimension_semantics=("parallel", "arbitrary"),
            vmem_limit_bytes=VMEM_LIMIT),
        cost_estimate=pl.CostEstimate(
            flops=flops_a, transcendentals=0, bytes_accessed=bytes_a),
    )(x, w1, b1)

    # --- kernel A2: tiny latent head + decoder trunk, whole arrays in VMEM
    # TODO(synk): eps could be generated on-chip with pltpu.prng_*; kept as a
    # host input so the reference check stays deterministic.
    z, mu, scale, d = pl.pallas_call(
        latent_trunk_kernel,
        out_shape=(
            jax.ShapeDtypeStruct((B, LATENT_D), jnp.float32),
            jax.ShapeDtypeStruct((B, LATENT_D), jnp.float32),
            jax.ShapeDtypeStruct((B, LATENT_D), jnp.float32),
            jax.ShapeDtypeStruct((B, NUM_NEURONS), jnp.bfloat16),
        ),
    )(h, eps, w2, b2, w3, b3, wml, bml, wd1, bd1, wd2, bd2)

    # --- kernel B: decoder output Linear(NN, F), tiled + parallel over F
    # TODO(synk): could be fused into A2's final phase via pltpu.emit_pipeline
    # (saves one launch + pipeline fill/drain); kept separate for clarity.
    num_f = F_PAD_DEC // DEC_TF
    flops_b = 2 * B * NUM_NEURONS * F_PAD_DEC
    bytes_b = (NUM_NEURONS * F_PAD_DEC * 2 + F_PAD_DEC * 4
               + B * NUM_NEURONS * 2 + B * F_PAD_DEC * 4)
    rec = pl.pallas_call(
        decoder_out_kernel,
        out_shape=jax.ShapeDtypeStruct((B, F_PAD_DEC), jnp.float32),
        grid_spec=pltpu.PrefetchScalarGridSpec(
            num_scalar_prefetch=0,
            grid=(num_f,),
            in_specs=[
                pl.BlockSpec((B, NUM_NEURONS), lambda j: (0, 0)),       # d bf16
                pl.BlockSpec((NUM_NEURONS, DEC_TF), lambda j: (0, j)),  # wd3 bf16
                pl.BlockSpec((1, DEC_TF), lambda j: (0, j)),            # bd3 f32
            ],
            out_specs=pl.BlockSpec((B, DEC_TF), lambda j: (0, j)),
        ),
        compiler_params=pltpu.CompilerParams(
            dimension_semantics=("parallel",),
            vmem_limit_bytes=VMEM_LIMIT),
        cost_estimate=pl.CostEstimate(
            flops=flops_b, transcendentals=0, bytes_accessed=bytes_b),
    )(d, wd3, bd3)

    feats_rst = rec[:, :N_FEATURES].reshape(B, NUM_JOINTS, FEAT_DIM)
    q_z_sample = z[None]                               # unsqueeze(0)
    return feats_rst, (q_z_sample, (mu, scale))


# ------------------- parameter construction / preparation -------------------
def _linear(key, fan_in, fan_out):
    kw, kb = jax.random.split(key)
    bound = fan_in ** -0.5
    w = jax.random.uniform(kw, (fan_in, fan_out), jnp.float32, -bound, bound)
    b = jax.random.uniform(kb, (1, fan_out), jnp.float32, -bound, bound)
    return w, b


def _batchnorm(n):
    # fresh BatchNorm1d: gamma=1, beta=0, running_mean=0, running_var=1
    return (jnp.ones((1, n), jnp.float32), jnp.zeros((1, n), jnp.float32),
            jnp.zeros((1, n), jnp.float32), jnp.ones((1, n), jnp.float32))


def init_raw_params(key):
    ks = jax.random.split(key, 8)
    bn1 = _batchnorm(N_FEATURES)
    w1, b1 = _linear(ks[0], N_FEATURES, NUM_NEURONS)
    bn2 = _batchnorm(NUM_NEURONS)
    w2, b2 = _linear(ks[1], NUM_NEURONS, NUM_NEURONS)
    w3, b3 = _linear(ks[2], NUM_NEURONS, NUM_NEURONS)
    wmu, bmu = _linear(ks[3], NUM_NEURONS, LATENT_D)
    wlv, blv = _linear(ks[4], NUM_NEURONS, LATENT_D)
    wd1, bd1 = _linear(ks[5], LATENT_D, NUM_NEURONS)
    wd2, bd2 = _linear(ks[6], NUM_NEURONS, NUM_NEURONS)
    wd3, bd3 = _linear(ks[7], NUM_NEURONS, N_FEATURES)
    return (bn1, w1, b1, bn2, w2, b2, w3, b3, wmu, bmu, wlv, blv,
            wd1, bd1, wd2, bd2, wd3, bd3)


def _fold_bn_into_linear(gamma, beta, mean, var, w, b):
    # y = ((x - mean)/sqrt(var+eps) * gamma + beta) @ w + b   (eval mode only)
    scale = gamma / jnp.sqrt(var + BN_EPS)             # (1, in)
    shift = beta - mean * scale                        # (1, in)
    w_f = w * scale.reshape(-1, 1)                     # diag(scale) @ w
    b_f = b + shift @ w
    return w_f, b_f


def prepare_kernel_params(raw):
    # TODO(synk): int8 (v5e/v6e) or fp8-e4m3 (v7x) per-channel weight quant of
    # w1/wd3 would halve the dominant HBM traffic again if numerics permit.
    (bn1, w1, b1, bn2, w2, b2, w3, b3, wmu, bmu, wlv, blv,
     wd1, bd1, wd2, bd2, wd3, bd3) = raw
    # fold eval-mode BatchNorms into adjacent Linears (exact in eval)
    w1f, b1f = _fold_bn_into_linear(*bn1, w1, b1)
    w2f, b2f = _fold_bn_into_linear(*bn2, w2, b2)
    # pad w1's K dim to the streaming-tile multiple; store bf16
    w1f = jnp.pad(w1f, ((0, F_PAD_ENC - N_FEATURES), (0, 0))).astype(jnp.bfloat16)
    # fuse mu / logvar heads into one lane-dense dot; store bf16
    wml = jnp.concatenate([wmu, wlv], axis=1).astype(jnp.bfloat16)
    bml = jnp.concatenate([bmu, blv], axis=1)
    # pad wd3/bd3 output dim to the output-tile multiple; store wd3 bf16
    wd3p = jnp.pad(wd3, ((0, 0), (0, F_PAD_DEC - N_FEATURES))).astype(jnp.bfloat16)
    bd3p = jnp.pad(bd3, ((0, 0), (0, F_PAD_DEC - N_FEATURES)))
    return (w1f, b1f,
            w2f.astype(jnp.bfloat16), b2f,
            w3.astype(jnp.bfloat16), b3,
            wml, bml,
            wd1.astype(jnp.bfloat16), bd1,
            wd2.astype(jnp.bfloat16), bd2,
            wd3p, bd3p)


# -------------------- pure-JAX reference (PyTorch eval semantics) ------------
def vposer_ref(features, eps, raw):
    (bn1, w1, b1, bn2, w2, b2, w3, b3, wmu, bmu, wlv, blv,
     wd1, bd1, wd2, bd2, wd3, bd3) = raw
    g1, be1, m1, v1 = bn1
    g2, be2, m2, v2 = bn2
    B = features.shape[0]
    h = features.reshape(B, -1)
    h = (h - m1) / jnp.sqrt(v1 + BN_EPS) * g1 + be1
    h = _leaky_relu(h @ w1 + b1)
    h = (h - m2) / jnp.sqrt(v2 + BN_EPS) * g2 + be2
    h = h @ w2 + b2
    h = h @ w3 + b3
    mu = h @ wmu + bmu
    scale = jax.nn.softplus(h @ wlv + blv)
    z = mu + scale * eps
    d = _leaky_relu(z @ wd1 + bd1)
    d = _leaky_relu(d @ wd2 + bd2)
    rec = d @ wd3 + bd3
    return rec.reshape(B, NUM_JOINTS, FEAT_DIM), z[None], mu, scale


if __name__ == "__main__":
    key = jax.random.PRNGKey(0)
    kx, keps, kp = jax.random.split(key, 3)
    features = jax.random.normal(kx, (BATCH, NUM_JOINTS, FEAT_DIM), jnp.float32)
    eps = jax.random.normal(keps, (BATCH, LATENT_D), jnp.float32)

    raw_params = init_raw_params(kp)
    kparams = prepare_kernel_params(raw_params)

    feats_rst, (q_z_sample, (mu, scale)) = vposer_forward(features, eps, kparams)
    jax.block_until_ready((feats_rst, q_z_sample, mu, scale))

    # sanity check against the full-f32 unfolded reference (bf16 weights +
    # bf16 activations + BN folding keep deviations well under tolerance)
    r_rec, r_z, r_mu, r_scale = vposer_ref(features, eps, raw_params)
    assert feats_rst.shape == (BATCH, NUM_JOINTS, FEAT_DIM)
    assert q_z_sample.shape == (1, BATCH, LATENT_D)
    assert bool(jnp.allclose(feats_rst, r_rec, atol=5e-2, rtol=5e-2))
    assert bool(jnp.allclose(q_z_sample, r_z, atol=5e-2, rtol=5e-2))
    assert bool(jnp.allclose(mu, r_mu, atol=5e-2, rtol=5e-2))
    assert bool(jnp.allclose(scale, r_scale, atol=5e-2, rtol=5e-2))

    print("KERNEL_OK")
</pallas_src>

<mosaic_0001>
module attributes {stable_mosaic.version = 11 : i64} {
  func.func @enc_stream_kernel(%arg0: i32, %arg1: i32, %arg2: memref<8x256xbf16, #tpu.memory_space<vmem>>, %arg3: memref<256x128xbf16, #tpu.memory_space<vmem>>, %arg4: memref<1x128xf32, #tpu.memory_space<vmem>>, %arg5: memref<8x128xbf16, #tpu.memory_space<vmem>>, %arg6: memref<8x128xf32, #tpu.memory_space<vmem>>) attributes {dimension_semantics = [#tpu.dimension_semantics<parallel>, #tpu.dimension_semantics<arbitrary>], iteration_bounds = array<i64: 1, 1>, scalar_prefetch = 0 : i64, scratch_operands = 1 : i64, tpu.core_type = #tpu.core_type<tc>, window_params = [{transform_indices = @transform_0, window_bounds = array<i64: 8, 256>}, {transform_indices = @transform_1, window_bounds = array<i64: 256, 128>}, {transform_indices = @transform_2, window_bounds = array<i64: 1, 128>}, {transform_indices = @transform_3, window_bounds = array<i64: 8, 128>}]} {
    %c0_i32 = arith.constant 0 : i32
    %0 = arith.cmpi eq, %arg1, %c0_i32 : i32
    %1 = arith.extui %0 : i1 to i32
    %c0_i32_0 = arith.constant 0 : i32
    %2 = arith.cmpi ne, %1, %c0_i32_0 : i32
    scf.if %2 {
      %cst_10 = arith.constant 0.000000e+00 : f32
      %12 = vector.broadcast %cst_10 : f32 to vector<8x128xf32>
      %c0_11 = arith.constant 0 : index
      %c0_12 = arith.constant 0 : index
      %13 = vector.load %arg6[%c0_11, %c0_12] : memref<8x128xf32, #tpu.memory_space<vmem>>, vector<8x128xf32>
      tpu.vector_store %arg6[%c0_11, %c0_12], %12 {strides = array<i32>} : memref<8x128xf32, #tpu.memory_space<vmem>>, vector<8x128xf32>,
    } else {
    }
    %c0 = arith.constant 0 : index
    %c0_1 = arith.constant 0 : index
    %3 = vector.load %arg6[%c0, %c0_1] : memref<8x128xf32, #tpu.memory_space<vmem>>, vector<8x128xf32>
    %c0_2 = arith.constant 0 : index
    %c0_3 = arith.constant 0 : index
    %4 = vector.load %arg2[%c0_2, %c0_3] : memref<8x256xbf16, #tpu.memory_space<vmem>>, vector<8x256xbf16>
    %c0_4 = arith.constant 0 : index
    %c0_5 = arith.constant 0 : index
    %5 = vector.load %arg3[%c0_4, %c0_5] : memref<256x128xbf16, #tpu.memory_space<vmem>>, vector<256x128xbf16>
    %cst = arith.constant dense<0.000000e+00> : vector<8x128xf32>
    %6 = tpu.matmul %4, %5, %cst {dimension_numbers = #tpu.dot_dimension_numbers<[1], [0], [0], [1], [0, 0, 1, 1], [], []>} : vector<8x256xbf16>, vector<256x128xbf16>, vector<8x128xf32> -> vector<8x128xf32>
    %7 = arith.addf %3, %6 : vector<8x128xf32>
    %c0_6 = arith.constant 0 : index
    %c0_7 = arith.constant 0 : index
    %8 = vector.load %arg6[%c0_6, %c0_7] : memref<8x128xf32, #tpu.memory_space<vmem>>, vector<8x128xf32>
    tpu.vector_store %arg6[%c0_6, %c0_7], %7 {strides = array<i32>} : memref<8x128xf32, #tpu.memory_space<vmem>>, vector<8x128xf32>,
    %c0_i32_8 = arith.constant 0 : i32
    %9 = arith.cmpi eq, %arg1, %c0_i32_8 : i32
    %10 = arith.extui %9 : i1 to i32
    %c0_i32_9 = arith.constant 0 : i32
    %11 = arith.cmpi ne, %10, %c0_i32_9 : i32
    scf.if %11 {
      %c0_10 = arith.constant 0 : index
      %c0_11 = arith.constant 0 : index
      %12 = vector.load %arg6[%c0_10, %c0_11] : memref<8x128xf32, #tpu.memory_space<vmem>>, vector<8x128xf32>
      %c0_12 = arith.constant 0 : index
      %c0_13 = arith.constant 0 : index
      %13 = vector.load %arg4[%c0_12, %c0_13] : memref<1x128xf32, #tpu.memory_space<vmem>>, vector<1x128xf32>
      %14 = vector.broadcast %13 : vector<1x128xf32> to vector<8x128xf32>
      %15 = arith.addf %12, %14 : vector<8x128xf32>
      %cst_14 = arith.constant 0.000000e+00 : f32
      %16 = vector.broadcast %cst_14 : f32 to vector<8x128xf32>
      %17 = arith.cmpf ogt, %15, %16 : vector<8x128xf32>
      %cst_15 = arith.constant 0.00999999977 : f32
      %18 = vector.broadcast %cst_15 : f32 to vector<8x128xf32>
      %19 = arith.mulf %18, %15 : vector<8x128xf32>
      %20 = arith.select %17, %15, %19 : vector<8x128xi1>, vector<8x128xf32>
      %21 = arith.truncf %20 : vector<8x128xf32> to vector<8x128xbf16>
      %c0_16 = arith.constant 0 : index
      %c0_17 = arith.constant 0 : index
      %22 = vector.load %arg5[%c0_16, %c0_17] : memref<8x128xbf16, #tpu.memory_space<vmem>>, vector<8x128xbf16>
      tpu.vector_store %arg5[%c0_16, %c0_17], %21 {strides = array<i32>} : memref<8x128xbf16, #tpu.memory_space<vmem>>, vector<8x128xbf16>,
    } else {
    }
    return
  }
  func.func @transform_0(%arg0: i32, %arg1: i32) -> (i32, i32) {
    %c0_i32 = arith.constant 0 : i32
    %c0_i32_0 = arith.constant 0 : i32
    return %c0_i32, %arg1 : i32, i32
  }
  func.func @transform_1(%arg0: i32, %arg1: i32) -> (i32, i32) {
    %c0_i32 = arith.constant 0 : i32
    return %arg1, %arg0 : i32, i32
  }
  func.func @transform_2(%arg0: i32, %arg1: i32) -> (i32, i32) {
    %c0_i32 = arith.constant 0 : i32
    %c0_i32_0 = arith.constant 0 : i32
    return %c0_i32, %arg0 : i32, i32
  }
  func.func @transform_3(%arg0: i32, %arg1: i32) -> (i32, i32) {
    %c0_i32 = arith.constant 0 : i32
    %c0_i32_0 = arith.constant 0 : i32
    return %c0_i32, %arg0 : i32, i32
  }
}

</mosaic_0001>

<llo_original>
// kernel: tpu_custom_call.1
$region0: #{tpu_custom_call.1}
  #allocation0 [shape = 'u32[]', space=smem, size = 0x4, offset = 0x4, fixed_abs, tag = 'smem constant byte address 0x4 - core index']
  #allocation1 [shape = 'u32[144,128]{1,0:T(1,128)}', space=vmem, size = 0x12000, scoped, tag = 'internal scratch']
  #allocation2 [shape = 'f32[8,128]{1,0:T(8,128)}', space=vmem, size = 0x1000, scoped, tag = 'scratch operand']
  %s0 = inlined_call_operand.hbm [shape: bf16[8,256], index: 0, kind: input, shape index: {}]
  %s1 = inlined_call_operand.hbm [shape: bf16[256,128], index: 1, kind: input, shape index: {}]
  %s2 = inlined_call_operand.hbm [shape: f32[1,128], index: 2, kind: input, shape index: {}]
  %s3 = inlined_call_operand.hbm [shape: bf16[8,128], index: 3, kind: output, shape index: {}]
  %s4 = sld [smem:[#allocation0]]
  $region42: #{tpu_custom_call.1} parent=0
    _
  %s6 = ssub.s32 1, %s4
  %s7 = scalar_select 0, %s6, %s4
  $region1: #{tpu_custom_call.1} parent=0
    #allocation3 [shape = 'u8[4096]{0}', space=vmem, size = 0x1000, scoped, tag = 'input window, operand 0, single buffered']
    #allocation4 [shape = 's32[1]{0}', space=sflag, size = 0x4, scoped, tag = 'scoped memory for tpu_custom_call.1']
    #allocation5 [shape = 's32[1]{0}', space=sflag, size = 0x4, scoped, tag = 'scoped memory for tpu_custom_call.1']
    #allocation6 [shape = 'u8[65536]{0}', space=vmem, size = 0x10000, scoped, tag = 'input window, operand 1, single buffered']
    #allocation7 [shape = 's32[1]{0}', space=sflag, size = 0x4, scoped, tag = 'scoped memory for tpu_custom_call.1']
    #allocation8 [shape = 'u8[512]{0}', space=vmem, size = 0x400, scoped, tag = 'input window, operand 2, single buffered']
    #allocation9 [shape = 'u8[2048]{0}', space=vmem, size = 0x800, scoped, tag = 'output window, operand 0, single buffered']
    %8 = vsyncpa [#allocation4], 0
    %9 = vsyncpa [#allocation7], 0
    %10 = vsyncpa [#allocation5], 0
    // Predicated region
    $region2: #{tpu_custom_call.1} parent=1 // pred_check
      _
    $region3: #{tpu_custom_call.1} parent=1 // pred_check_branch
      %12 = sbr.rel (0) target = $region5
    $region4: #{tpu_custom_call.1} parent=1 // pred_region
      %s14 = ssub.s32 128, 128
      %15 = vsyncadd [#allocation4], %s14
      %s17 = sshll.u32 [#allocation3], 4
      %s18 = int_to_ptr.vmem [resolvable:$true] %s17
      %20 = dma.hbm_to_vmem [thread:$0]  %s0, 128, %s18, [#allocation4]
    $region5: #{tpu_custom_call.1} parent=1 // pred_fallthru
      _
    // Predicated region
    $region6: #{tpu_custom_call.1} parent=1 // pred_check
      _
    $region7: #{tpu_custom_call.1} parent=1 // pred_check_branch
      %22 = sbr.rel (0) target = $region9
    $region8: #{tpu_custom_call.1} parent=1 // pred_region
      %s24 = ssub.s32 2048, 2048
      %25 = vsyncadd [#allocation7], %s24
      %s26 = sshll.u32 [#allocation6], 4
      %s27 = int_to_ptr.vmem [resolvable:$true] %s26
      %32 = dma.hbm_to_vmem [thread:$0]  %s1, 2048, %s27, [#allocation7], 64, 64, 4
    $region9: #{tpu_custom_call.1} parent=1 // pred_fallthru
      _
    // Predicated region
    $region10: #{tpu_custom_call.1} parent=1 // pred_check
      _
    $region11: #{tpu_custom_call.1} parent=1 // pred_check_branch
      %34 = sbr.rel (0) target = $region13
    $region12: #{tpu_custom_call.1} parent=1 // pred_region
      %s36 = ssub.s32 16, 16
      %37 = vsyncadd [#allocation7], %s36
      %s39 = sshll.u32 [#allocation8], 4
      %s40 = int_to_ptr.vmem [resolvable:$true] %s39
      %42 = dma.hbm_to_vmem [thread:$0]  %s2, 16, %s40, [#allocation7]
    $region13: #{tpu_custom_call.1} parent=1 // pred_fallthru
      _
    // Predicated region
    $region14: #{tpu_custom_call.1} parent=1 // pred_check
      _
    $region15: #{tpu_custom_call.1} parent=1 // pred_check_branch
      %44 = sbr.rel (0) target = $region17
    $region16: #{tpu_custom_call.1} parent=1 // pred_region
      %45 = dma.done [#allocation4], 128
    $region17: #{tpu_custom_call.1} parent=1 // pred_fallthru
      _
    // Predicated region
    $region18: #{tpu_custom_call.1} parent=1 // pred_check
      _
    $region19: #{tpu_custom_call.1} parent=1 // pred_check_branch
      %47 = sbr.rel (0) target = $region21
    $region20: #{tpu_custom_call.1} parent=1 // pred_region
      %48 = dma.done [#allocation7], 2048
    $region21: #{tpu_custom_call.1} parent=1 // pred_fallthru
      _
    // Predicated region
    $region22: #{tpu_custom_call.1} parent=1 // pred_check
      _
    $region23: #{tpu_custom_call.1} parent=1 // pred_check_branch
      %50 = sbr.rel (0) target = $region25
    $region24: #{tpu_custom_call.1} parent=1 // pred_region
      %51 = dma.done [#allocation7], 16
    $region25: #{tpu_custom_call.1} parent=1 // pred_fallthru
      _
    %p53 = scmp.eq.s32.totalorder 0, 0
    // Predicated region
    $region26: #{tpu_custom_call.1} parent=1 // pred_check
      %p54 = pneg %p53
    $region27: #{tpu_custom_call.1} parent=1 // pred_check_branch
      %56 = sbr.rel (%p54) target = $region29
    $region28: #{tpu_custom_call.1} parent=1 // pred_region
      %57 = vst [vmem:[#allocation2] sm:$0xff] 0.0
    $region29: #{tpu_custom_call.1} parent=1 // pred_fallthru
      _
    %v58 = vld [vmem:[#allocation2] sm:$0xff]
    %v59 = vld [vmem:[#allocation3] sm:$0xff]
    %v60 = vld [vmem:[#allocation6] sm:$0xf]
    %v61 = vld [vmem:[#allocation6 + $0x4] sm:$0xf]
    %v62 = vld [vmem:[#allocation6 + $0x8] sm:$0xf]
    %v63 = vld [vmem:[#allocation6 + $0xc] sm:$0xf]
    %v64 = vld [vmem:[#allocation6 + $0x10] sm:$0xf]
    %v65 = vld [vmem:[#allocation6 + $0x14] sm:$0xf]
    %v66 = vld [vmem:[#allocation6 + $0x18] sm:$0xf]
    %v67 = vld [vmem:[#allocation6 + $0x1c] sm:$0xf]
    %v68 = vld [vmem:[#allocation6 + $0x20] sm:$0xf]
    %v69 = vld [vmem:[#allocation6 + $0x24] sm:$0xf]
    %v70 = vld [vmem:[#allocation6 + $0x28] sm:$0xf]
    %v71 = vld [vmem:[#allocation6 + $0x2c] sm:$0xf]
    %v72 = vld [vmem:[#allocation6 + $0x30] sm:$0xf]
    %v73 = vld [vmem:[#allocation6 + $0x34] sm:$0xf]
    %v74 = vld [vmem:[#allocation6 + $0x38] sm:$0xf]
    %v75 = vld [vmem:[#allocation6 + $0x3c] sm:$0xf]
    %v76 = vld [vmem:[#allocation6 + $0x40] sm:$0xf]
    %v77 = vld [vmem:[#allocation6 + $0x44] sm:$0xf]
    %v78 = vld [vmem:[#allocation6 + $0x48] sm:$0xf]
    %v79 = vld [vmem:[#allocation6 + $0x4c] sm:$0xf]
    %v80 = vld [vmem:[#allocation6 + $0x50] sm:$0xf]
    %v81 = vld [vmem:[#allocation6 + $0x54] sm:$0xf]
    %v82 = vld [vmem:[#allocation6 + $0x58] sm:$0xf]
    %v83 = vld [vmem:[#allocation6 + $0x5c] sm:$0xf]
    %v84 = vld [vmem:[#allocation6 + $0x60] sm:$0xf]
    %v85 = vld [vmem:[#allocation6 + $0x64] sm:$0xf]
    %v86 = vld [vmem:[#allocation6 + $0x68] sm:$0xf]
    %v87 = vld [vmem:[#allocation6 + $0x6c] sm:$0xf]
    %v88 = vld [vmem:[#allocation6 + $0x70] sm:$0xf]
    %v89 = vld [vmem:[#allocation6 + $0x74] sm:$0xf]
    %v90 = vld [vmem:[#allocation6 + $0x78] sm:$0xf]
    %v91 = vld [vmem:[#allocation6 + $0x7c] sm:$0xf]
    %v93 = vunpack.c.l.b16 %v59
    %v94 = vunpack.c.h.b16 %v59
    %v95 = vpack.c.b16 %v93, %v93
    %v96 = vpack.c.b16 %v94, %v94
    %v131 = vunpack.c.l.b16 %v60
    %v132 = vunpack.c.l.b16 %v61
    %v133 = vunpack.c.l.b16 %v62
    %v134 = vunpack.c.l.b16 %v63
    %v135 = vunpack.c.l.b16 %v64
    %v136 = vunpack.c.l.b16 %v65
    %v137 = vunpack.c.l.b16 %v66
    %v138 = vunpack.c.l.b16 %v67
    %v139 = vunpack.c.l.b16 %v68
    %v140 = vunpack.c.l.b16 %v69
    %v141 = vunpack.c.l.b16 %v70
    %v142 = vunpack.c.l.b16 %v71
    %v143 = vunpack.c.l.b16 %v72
    %v144 = vunpack.c.l.b16 %v73
    %v145 = vunpack.c.l.b16 %v74
    %v146 = vunpack.c.l.b16 %v75
    %v147 = vunpack.c.l.b16 %v76
    %v148 = vunpack.c.l.b16 %v77
    %v149 = vunpack.c.l.b16 %v78
    %v150 = vunpack.c.l.b16 %v79
    %v151 = vunpack.c.l.b16 %v80
    %v152 = vunpack.c.l.b16 %v81
    %v153 = vunpack.c.l.b16 %v82
    %v154 = vunpack.c.l.b16 %v83
    %v155 = vunpack.c.l.b16 %v84
    %v156 = vunpack.c.l.b16 %v85
    %v157 = vunpack.c.l.b16 %v86
    %v158 = vunpack.c.l.b16 %v87
    %v159 = vunpack.c.l.b16 %v88
    %v160 = vunpack.c.l.b16 %v89
    %v161 = vunpack.c.l.b16 %v90
    %v162 = vunpack.c.l.b16 %v91
    %v163 = vpack.c.b16 %v132, %v131
    %v164 = vpack.c.b16 %v134, %v133
    %v165 = vpack.c.b16 %v136, %v135
    %v166 = vpack.c.b16 %v138, %v137
    %v167 = vpack.c.b16 %v140, %v139
    %v168 = vpack.c.b16 %v142, %v141
    %v169 = vpack.c.b16 %v144, %v143
    %v170 = vpack.c.b16 %v146, %v145
    %v171 = vpack.c.b16 %v148, %v147
    %v172 = vpack.c.b16 %v150, %v149
    %v173 = vpack.c.b16 %v152, %v151
    %v174 = vpack.c.b16 %v154, %v153
    %v175 = vpack.c.b16 %v156, %v155
    %v176 = vpack.c.b16 %v158, %v157
    %v177 = vpack.c.b16 %v160, %v159
    %v178 = vpack.c.b16 %v162, %v161
    %195 = vmatprep.subr.bf16.mxu0 0
    %196 = vmatpush1.bf16.msra.mxu0 %v163
    %197 = vmatprep.subr.bf16.mxu0 0
    %198 = vmatpush1.bf16.msra.mxu0 %v164
    %199 = vmatprep.subr.bf16.mxu0 0
    %200 = vmatpush1.bf16.msra.mxu0 %v165
    %201 = vmatprep.subr.bf16.mxu0 0
    %202 = vmatpush1.bf16.msra.mxu0 %v166
    %203 = vmatprep.subr.bf16.mxu0 0
    %204 = vmatpush1.bf16.msra.mxu0 %v167
    %205 = vmatprep.subr.bf16.mxu0 0
    %206 = vmatpush1.bf16.msra.mxu0 %v168
    %207 = vmatprep.subr.bf16.mxu0 0
    %208 = vmatpush1.bf16.msra.mxu0 %v169
    %209 = vmatprep.subr.bf16.mxu0 0
    %210 = vmatpush1.bf16.msra.mxu0 %v170
    %211 = vmatprep.subr.bf16.mxu0 0
    %212 = vmatpush1.bf16.msra.mxu0 %v171
    %213 = vmatprep.subr.bf16.mxu0 0
    %214 = vmatpush1.bf16.msra.mxu0 %v172
    %215 = vmatprep.subr.bf16.mxu0 0
    %216 = vmatpush1.bf16.msra.mxu0 %v173
    %217 = vmatprep.subr.bf16.mxu0 0
    %218 = vmatpush1.bf16.msra.mxu0 %v174
    %219 = vmatprep.subr.bf16.mxu0 0
    %220 = vmatpush1.bf16.msra.mxu0 %v175
    %221 = vmatprep.subr.bf16.mxu0 0
    %222 = vmatpush1.bf16.msra.mxu0 %v176
    %223 = vmatprep.subr.bf16.mxu0 0
    %224 = vmatpush1.bf16.msra.mxu0 %v177
    %225 = vmatprep.subr.bf16.mxu0 0
    %226 = vmatpush1.bf16.msra.mxu0 %v178
    %227 = vmatprep.mubr.bf16.mxu0 %v96
    %228 = vmatmul.mubr.bf16.gmra.mrb[0].mxu0 %v95
    %v229 = vpop.f32.mrb[0].mxu0
    %v230 = vadd.f32 0.0, %v229
    %v231 = vpop.f32.mrb[0].mxu0
    %v232 = vpop.f32.mrb[0].mxu0
    %v233 = vpop.f32.mrb[0].mxu0
    %234 = vdwg.mxu0
    %v235 = vadd.f32 %v58, %v230
    %236 = vst [vmem:[#allocation2] sm:$0xff] %v235
    // Predicated region
    $region30: #{tpu_custom_call.1} parent=1 // pred_check
      %p237 = pneg %p53
    $region31: #{tpu_custom_call.1} parent=1 // pred_check_branch
      %239 = sbr.rel (%p237) target = $region33
    $region32: #{tpu_custom_call.1} parent=1 // pred_region
      %v240 = vld [vmem:[#allocation2] sm:$0xff]
      %v241 = vld [vmem:[#allocation8] sm:$0x1]
      %v243 = vlaneseq
      %v244 = vshrl.u32 %v243, 7
      %v245 = vsub.s32 0, %v244
      %v246 = vrot.slane %v241, %v245
      %v248 = vadd.f32 %v240, %v246
      %vm249 = vcmp.gt.f32.partialorder %v248, 0.0
      %v250 = vmul.f32 %v248, 0.01
      %v251 = vsel %vm249, %v248, %v250
      %v252 = vpack.c.bf16 %v251, %v251
      %253 = vst [vmem:[#allocation9] sm:$0xf] %v252
    $region33: #{tpu_custom_call.1} parent=1 // pred_fallthru
      _
    // Predicated region
    $region34: #{tpu_custom_call.1} parent=1 // pred_check
      _
    $region35: #{tpu_custom_call.1} parent=1 // pred_check_branch
      %255 = sbr.rel (0) target = $region37
    $region36: #{tpu_custom_call.1} parent=1 // pred_region
      %s257 = ssub.s32 64, 64
      %258 = vsyncadd [#allocation5], %s257
      %s260 = sshll.u32 [#allocation9], 4
      %s261 = int_to_ptr.vmem [resolvable:$true] %s260
      %263 = dma.vmem_to_hbm [thread:$0]  %s261, 64, %s3, [#allocation5]
    $region37: #{tpu_custom_call.1} parent=1 // pred_fallthru
      _
    // Predicated region
    $region38: #{tpu_custom_call.1} parent=1 // pred_check
      _
    $region39: #{tpu_custom_call.1} parent=1 // pred_check_branch
      %265 = sbr.rel (0) target = $region41
    $region40: #{tpu_custom_call.1} parent=1 // pred_region
      %266 = dma.done [#allocation5], 64
    $region41: #{tpu_custom_call.1} parent=1 // pred_fallthru
      _
    %267 = vsyncpa [#allocation4], 1
    %268 = vsyncpa [#allocation7], 1
    %269 = vsyncpa [#allocation5], 1

</llo_original>
